<compile_context>
chip_gen: v5e
topology: v5e:2x2
jax: 0.10.0
libtpu: 0.0.40
codegen_flags: <defaults>
</compile_context>

<pallas_src>
import functools

import jax
import jax.numpy as jnp
from jax import lax
from jax.experimental import pallas as pl
from jax.experimental.pallas import tpu as pltpu

_LANE = 128


def _group_norm_kernel(x_ref, gamma_ref, beta_ref, o_ref, *, eps, n_valid):
    # x_ref:     (Nb, G, R, 128)  Nb batch elements, all groups, lane-dense rows
    # gamma_ref: (G, R, 1)        per-row (i.e. per-channel, repeated) scale
    # beta_ref:  (G, R, 1)        per-row shift
    x = x_ref[...].astype(jnp.float32)

    inv_n = 1.0 / n_valid
    # Single pass over the block: sum and sum of squares (zero padding contributes 0).
    row_s = jnp.sum(x, axis=3, keepdims=True)            # lane reduce  -> (Nb,G,R,1)
    row_ss = jnp.sum(x * x, axis=3, keepdims=True)       #              -> (Nb,G,R,1)
    s = jnp.sum(row_s, axis=2, keepdims=True)            # sublane reduce -> (Nb,G,1,1)
    ss = jnp.sum(row_ss, axis=2, keepdims=True)          #              -> (Nb,G,1,1)

    mean = s * inv_n
    var = ss * inv_n - mean * mean                       # biased variance (nn.GroupNorm)
    inv = lax.rsqrt(var + eps)                           # EUP            -> (Nb,G,1,1)

    gamma = gamma_ref[...].astype(jnp.float32)           # (G, R, 1)
    beta = beta_ref[...].astype(jnp.float32)
    scale = gamma * inv                                   # (Nb, G, R, 1)
    shift = beta - mean * scale                           # (Nb, G, R, 1)

    # Fused normalize + affine: one multiply-add per element.
    o_ref[...] = (x * scale + shift).astype(o_ref.dtype)


def switchable_group_norm(x, gammas, betas, idx, num_groups, eps=1e-5):
    """Pallas implementation of SwitchableGroupnorm.forward(x, idx).

    x:      (N, C, H, W) with C == num_features_list[idx]
    gammas: list of (C_i,) scale params, one per entry of num_features_list
    betas:  list of (C_i,) shift params
    idx:    static int selecting which GroupNorm to apply
    """
    gamma = gammas[idx]
    beta = betas[idx]
    N, C, H, W = x.shape
    G = num_groups
    assert C % G == 0 and C == gamma.shape[0]
    Cg = C // G
    HW = H * W

    rep = pl.cdiv(HW, _LANE)          # 128-wide rows per channel
    HWp = rep * _LANE                 # lane-padded spatial size
    R = Cg * rep                      # sublane rows per (n, g) slab

    # Lane-dense layout: (N, C, HW) -> zero-pad HW -> (N, G, R, 128).
    x3 = x.reshape(N, C, HW)
    if HWp != HW:
        x3 = jnp.pad(x3, ((0, 0), (0, 0), (0, HWp - HW)))
    x4 = x3.reshape(N, G, R, _LANE)

    # Per-row affine params (each channel value repeated `rep` times), tiny arrays.
    gamma3 = jnp.broadcast_to(gamma.reshape(G, Cg, 1), (G, Cg, rep)).reshape(G, R, 1)
    beta3 = jnp.broadcast_to(beta.reshape(G, Cg, 1), (G, Cg, rep)).reshape(G, R, 1)

    # Aggregate several batch elements per grid step; target ~4 MiB of input per block.
    itemsize = jnp.dtype(x.dtype).itemsize
    slab_bytes = G * R * _LANE * itemsize
    target_block_bytes = 4 * 1024 * 1024
    Nb = max(1, min(N, target_block_bytes // max(slab_bytes, 1)))
    # Keep >= 2 grid steps when possible so both v7x TensorCores get work.
    if N > 1 and pl.cdiv(N, Nb) < 2:
        Nb = pl.cdiv(N, 2)
    grid = (pl.cdiv(N, Nb),)

    kernel = functools.partial(
        _group_norm_kernel, eps=float(eps), n_valid=float(Cg * HW))

    out = pl.pallas_call(
        kernel,
        out_shape=jax.ShapeDtypeStruct((N, G, R, _LANE), x.dtype),
        grid=grid,
        in_specs=[
            pl.BlockSpec((Nb, G, R, _LANE), lambda i: (i, 0, 0, 0)),
            # Full-resident params, constant block index -> DMA'd once, not per step.
            pl.BlockSpec((G, R, 1), lambda i: (0, 0, 0)),
            pl.BlockSpec((G, R, 1), lambda i: (0, 0, 0)),
        ],
        out_specs=pl.BlockSpec((Nb, G, R, _LANE), lambda i: (i, 0, 0, 0)),
        compiler_params=pltpu.CompilerParams(
            dimension_semantics=("parallel",),
            vmem_limit_bytes=48 * 1024 * 1024,
        ),
    )(x4, gamma3, beta3)

    out = out.reshape(N, C, HWp)
    if HWp != HW:
        out = out[:, :, :HW]
    return out.reshape(N, C, H, W)


def _ref_group_norm(x, gamma, beta, num_groups, eps=1e-5):
    """Pure-JAX reference matching torch.nn.GroupNorm semantics."""
    N, C, H, W = x.shape
    xg = x.reshape(N, num_groups, -1).astype(jnp.float32)
    mean = xg.mean(axis=-1, keepdims=True)
    var = xg.var(axis=-1, keepdims=True)
    xn = (xg - mean) / jnp.sqrt(var + eps)
    xn = xn.reshape(N, C, H, W)
    return xn * gamma.reshape(1, C, 1, 1) + beta.reshape(1, C, 1, 1)


if __name__ == "__main__":
    # Module configuration (synthetic, deterministic init).
    num_groups = 2
    num_features_list = [4, 8]

    key = jax.random.PRNGKey(0)
    kx1, kx2, *kparams = jax.random.split(key, 2 + 2 * len(num_features_list))

    # Deterministic per-width affine parameters (torch default would be ones/zeros;
    # random values exercise the affine path).
    gammas, betas = [], []
    for i, c_i in enumerate(num_features_list):
        kg, kb = kparams[2 * i], kparams[2 * i + 1]
        gammas.append(jax.random.normal(kg, (c_i,), dtype=jnp.float32))
        betas.append(jax.random.normal(kb, (c_i,), dtype=jnp.float32))

    # Case 1: idx=1 (8-channel GroupNorm), HW already a multiple of 128.
    idx = 1
    N, C, H, W = 2, num_features_list[idx], 16, 16
    x = jax.random.normal(kx1, (N, C, H, W), dtype=jnp.float32)
    y = jax.block_until_ready(switchable_group_norm(x, gammas, betas, idx, num_groups))
    y_ref = _ref_group_norm(x, gammas[idx], betas[idx], num_groups)
    assert y.shape == x.shape
    assert jnp.allclose(y, y_ref, rtol=1e-5, atol=1e-5), (
        f"case1 max abs err {jnp.max(jnp.abs(y - y_ref))}"
    )

    # Case 2: idx=0 (4-channel GroupNorm), awkward spatial size exercising the
    # lane-padding path (14*14 = 196 -> padded to 256).
    idx2 = 0
    N2, C2, H2, W2 = 2, num_features_list[idx2], 14, 14
    x2 = jax.random.normal(kx2, (N2, C2, H2, W2), dtype=jnp.float32)
    y2 = jax.block_until_ready(
        switchable_group_norm(x2, gammas, betas, idx2, num_groups))
    y2_ref = _ref_group_norm(x2, gammas[idx2], betas[idx2], num_groups)
    assert y2.shape == x2.shape
    assert jnp.allclose(y2, y2_ref, rtol=1e-5, atol=1e-5), (
        f"case2 max abs err {jnp.max(jnp.abs(y2 - y2_ref))}"
    )

    print("KERNEL_OK")
</pallas_src>

<mosaic_0001>
module attributes {stable_mosaic.version = 11 : i64} {
  func.func @_group_norm_kernel(%arg0: i32, %arg1: memref<1x2x8x128xf32, #tpu.memory_space<vmem>>, %arg2: memref<2x8x1xf32, #tpu.memory_space<vmem>>, %arg3: memref<2x8x1xf32, #tpu.memory_space<vmem>>, %arg4: memref<1x2x8x128xf32, #tpu.memory_space<vmem>>) attributes {dimension_semantics = [#tpu.dimension_semantics<parallel>], iteration_bounds = array<i64: 2>, scalar_prefetch = 0 : i64, scratch_operands = 0 : i64, tpu.core_type = #tpu.core_type<tc>, window_params = [{transform_indices = @transform_0, window_bounds = array<i64: 1, 2, 8, 128>}, {pipeline_mode = #tpu.pipeline_mode<synchronous>, transform_indices = @transform_1, window_bounds = array<i64: 2, 8, 1>}, {pipeline_mode = #tpu.pipeline_mode<synchronous>, transform_indices = @transform_2, window_bounds = array<i64: 2, 8, 1>}, {transform_indices = @transform_3, window_bounds = array<i64: 1, 2, 8, 128>}]} {
    %c0 = arith.constant 0 : index
    %c0_0 = arith.constant 0 : index
    %c0_1 = arith.constant 0 : index
    %c0_2 = arith.constant 0 : index
    %0 = vector.load %arg1[%c0, %c0_0, %c0_1, %c0_2] : memref<1x2x8x128xf32, #tpu.memory_space<vmem>>, vector<1x2x8x128xf32>
    %cst = arith.constant dense<0.000000e+00> : vector<1x2x8xf32>
    %1 = vector.multi_reduction <add>, %0, %cst [3] : vector<1x2x8x128xf32> to vector<1x2x8xf32>
    %2 = vector.shape_cast %1 : vector<1x2x8xf32> to vector<1x2x8x1xf32>
    %3 = arith.mulf %0, %0 : vector<1x2x8x128xf32>
    %cst_3 = arith.constant dense<0.000000e+00> : vector<1x2x8xf32>
    %4 = vector.multi_reduction <add>, %3, %cst_3 [3] : vector<1x2x8x128xf32> to vector<1x2x8xf32>
    %5 = vector.shape_cast %4 : vector<1x2x8xf32> to vector<1x2x8x1xf32>
    %cst_4 = arith.constant dense<0.000000e+00> : vector<1x2x1xf32>
    %6 = vector.multi_reduction <add>, %2, %cst_4 [2] : vector<1x2x8x1xf32> to vector<1x2x1xf32>
    %7 = vector.shape_cast %6 : vector<1x2x1xf32> to vector<1x2x1x1xf32>
    %cst_5 = arith.constant dense<0.000000e+00> : vector<1x2x1xf32>
    %8 = vector.multi_reduction <add>, %5, %cst_5 [2] : vector<1x2x8x1xf32> to vector<1x2x1xf32>
    %9 = vector.shape_cast %8 : vector<1x2x1xf32> to vector<1x2x1x1xf32>
    %cst_6 = arith.constant 9.765625E-4 : f32
    %10 = vector.broadcast %cst_6 : f32 to vector<1x2x1x1xf32>
    %11 = arith.mulf %7, %10 : vector<1x2x1x1xf32>
    %cst_7 = arith.constant 9.765625E-4 : f32
    %12 = vector.broadcast %cst_7 : f32 to vector<1x2x1x1xf32>
    %13 = arith.mulf %9, %12 : vector<1x2x1x1xf32>
    %14 = arith.mulf %11, %11 : vector<1x2x1x1xf32>
    %15 = arith.subf %13, %14 : vector<1x2x1x1xf32>
    %cst_8 = arith.constant 9.99999974E-6 : f32
    %16 = vector.broadcast %cst_8 : f32 to vector<1x2x1x1xf32>
    %17 = arith.addf %15, %16 : vector<1x2x1x1xf32>
    %18 = math.rsqrt %17 : vector<1x2x1x1xf32>
    %c0_9 = arith.constant 0 : index
    %c0_10 = arith.constant 0 : index
    %c0_11 = arith.constant 0 : index
    %19 = vector.load %arg2[%c0_9, %c0_10, %c0_11] : memref<2x8x1xf32, #tpu.memory_space<vmem>>, vector<2x8x1xf32>
    %c0_12 = arith.constant 0 : index
    %c0_13 = arith.constant 0 : index
    %c0_14 = arith.constant 0 : index
    %20 = vector.load %arg3[%c0_12, %c0_13, %c0_14] : memref<2x8x1xf32, #tpu.memory_space<vmem>>, vector<2x8x1xf32>
    %21 = vector.shape_cast %19 : vector<2x8x1xf32> to vector<1x2x8x1xf32>
    %22 = vector.broadcast %18 : vector<1x2x1x1xf32> to vector<1x2x8x1xf32>
    %23 = arith.mulf %21, %22 : vector<1x2x8x1xf32>
    %24 = vector.broadcast %11 : vector<1x2x1x1xf32> to vector<1x2x8x1xf32>
    %25 = arith.mulf %24, %23 : vector<1x2x8x1xf32>
    %26 = vector.shape_cast %20 : vector<2x8x1xf32> to vector<1x2x8x1xf32>
    %27 = arith.subf %26, %25 : vector<1x2x8x1xf32>
    %28 = vector.broadcast %23 : vector<1x2x8x1xf32> to vector<1x2x8x128xf32>
    %29 = arith.mulf %0, %28 : vector<1x2x8x128xf32>
    %30 = vector.broadcast %27 : vector<1x2x8x1xf32> to vector<1x2x8x128xf32>
    %31 = arith.addf %29, %30 : vector<1x2x8x128xf32>
    %c0_15 = arith.constant 0 : index
    %c0_16 = arith.constant 0 : index
    %c0_17 = arith.constant 0 : index
    %c0_18 = arith.constant 0 : index
    %32 = vector.load %arg4[%c0_15, %c0_16, %c0_17, %c0_18] : memref<1x2x8x128xf32, #tpu.memory_space<vmem>>, vector<1x2x8x128xf32>
    tpu.vector_store %arg4[%c0_15, %c0_16, %c0_17, %c0_18], %31 {strides = array<i32>} : memref<1x2x8x128xf32, #tpu.memory_space<vmem>>, vector<1x2x8x128xf32>,
    return
  }
  func.func @transform_0(%arg0: i32) -> (i32, i32, i32, i32) {
    %c0_i32 = arith.constant 0 : i32
    %c0_i32_0 = arith.constant 0 : i32
    %c0_i32_1 = arith.constant 0 : i32
    %c0_i32_2 = arith.constant 0 : i32
    return %arg0, %c0_i32, %c0_i32_0, %c0_i32_1 : i32, i32, i32, i32
  }
  func.func @transform_1(%arg0: i32) -> (i32, i32, i32) {
    %c0_i32 = arith.constant 0 : i32
    %c0_i32_0 = arith.constant 0 : i32
    %c0_i32_1 = arith.constant 0 : i32
    %c0_i32_2 = arith.constant 0 : i32
    return %c0_i32, %c0_i32_0, %c0_i32_1 : i32, i32, i32
  }
  func.func @transform_2(%arg0: i32) -> (i32, i32, i32) {
    %c0_i32 = arith.constant 0 : i32
    %c0_i32_0 = arith.constant 0 : i32
    %c0_i32_1 = arith.constant 0 : i32
    %c0_i32_2 = arith.constant 0 : i32
    return %c0_i32, %c0_i32_0, %c0_i32_1 : i32, i32, i32
  }
  func.func @transform_3(%arg0: i32) -> (i32, i32, i32, i32) {
    %c0_i32 = arith.constant 0 : i32
    %c0_i32_0 = arith.constant 0 : i32
    %c0_i32_1 = arith.constant 0 : i32
    %c0_i32_2 = arith.constant 0 : i32
    return %arg0, %c0_i32, %c0_i32_0, %c0_i32_1 : i32, i32, i32, i32
  }
}

</mosaic_0001>

<llo_original>
// kernel: tpu_custom_call.1
$region0: #{tpu_custom_call.1}
  #allocation0 [shape = 'u32[]', space=smem, size = 0x4, offset = 0x4, fixed_abs, tag = 'smem constant byte address 0x4 - core index']
  #allocation1 [shape = 'u32[72,128]{1,0:T(1,128)}', space=vmem, size = 0x9000, scoped, tag = 'internal scratch']
  %s0 = inlined_call_operand.vmem [shape: f32[2,2,8,128], index: 0, kind: input, shape index: {}]
  %s1 = inlined_call_operand.vmem [shape: f32[2,8,1], index: 1, kind: input, shape index: {}]
  %s2 = inlined_call_operand.vmem [shape: f32[2,8,1], index: 2, kind: input, shape index: {}]
  %s3 = inlined_call_operand.hbm [shape: f32[2,2,8,128], index: 3, kind: output, shape index: {}]
  %s4 = sld [smem:[#allocation0]]
  $region45: #{tpu_custom_call.1} parent=0
    _
  %s6 = ssub.s32 1, %s4
  %s7 = scalar_select 0, %s6, %s4
  $region1: #{tpu_custom_call.1} parent=0
    #allocation2 [shape = 'u8[16384]{0}', space=vmem, size = 0x4000, scoped, tag = 'output window, operand 0']
    #allocation3 [shape = 's32[2]{0}', space=sflag, size = 0x8, scoped, tag = 'scoped memory for tpu_custom_call.1']
    %8 = vsyncpa [#allocation3], 0
    %s9 = scalar_lea.sflag [#allocation3], 1
    %10 = vsyncpa %s9, 0
    loop: start=0, step=1, limit=4
    $region2: #{tpu_custom_call.1} parent=1 // loop_pre_header
      _
    $region3: #{tpu_custom_call.1} parent=1 // loop_header
      %s12 = sphi 0, %s16
      %p13 = scmp.ge.s32.totalorder %s12, 4
      %s22 = sphi 0, %s24
      %s25 = sphi 0, %s22
      %s26 = sphi 0, %s25
      %s42 = sphi 0, %s26
      %s46 = sphi 0, %s46
      %s48 = sphi 0, %s46
      %s49 = sphi 0, %s48
      %s63 = sphi 0, %s49
      %s67 = sphi 0, %s67
      %s69 = sphi 0, %s67
      %s70 = sphi 0, %s69
      %s84 = sphi 0, %s70
      %s90 = sphi 0, %s92
      %s93 = sphi 0, %s90
      %s94 = sphi 0, %s93
      %s110 = sphi 0, %s94
    $region4: #{tpu_custom_call.1} parent=1 // loop_header_branch
      %15 = sbr.rel (%p13) target = $region8
    $region5: #{tpu_custom_call.1} parent=1 // loop_body
      %s17 = ssub.s32 %s12, 1
      %s18 = ssub.s32 %s12, 2
      %s19 = sadd.s32 %s12, 1
      %s20 = ssub.s32 %s12, %s19
      %p21 = scmp.eq.s32.totalorder %s20, 0
      %s23 = sadd.s32 %s22, 1
      %s24 = scalar_select %p21, %s22, %s23
      %p27 = pneg %p21
      %p28 = scmp.eq.s32.totalorder %s12, 1
      %p29 = por %p27, %p28
      %p30 = scmp.ne.s32.totalorder %s22, %s25
      %p31 = scmp.eq.s32.totalorder %s12, 0
      %p32 = por %p30, %p31
      %p33 = scmp.ne.s32.totalorder %s22, %s25
      %p34 = scmp.eq.s32.totalorder %s17, 1
      %p35 = por %p33, %p34
      %p36 = scmp.ne.s32.totalorder %s25, %s26
      %p37 = scmp.eq.s32.totalorder %s17, 0
      %p38 = por %p36, %p37
      %p39 = scmp.ne.s32.totalorder %s25, %s26
      %p40 = scmp.eq.s32.totalorder %s18, 1
      %p41 = por %p39, %p40
      %p43 = scmp.ne.s32.totalorder %s26, %s42
      %p44 = scmp.eq.s32.totalorder %s18, 0
      %p45 = por %p43, %p44
      %s47 = sadd.s32 %s46, 1
      %p50 = scmp.eq.s32.totalorder %s12, 1
      %p51 = scmp.ne.s32.totalorder %s46, %s48
      %p52 = scmp.eq.s32.totalorder %s12, 0
      %p53 = por %p51, %p52
      %p54 = scmp.ne.s32.totalorder %s46, %s48
      %p55 = scmp.eq.s32.totalorder %s17, 1
      %p56 = por %p54, %p55
      %p57 = scmp.ne.s32.totalorder %s48, %s49
      %p58 = scmp.eq.s32.totalorder %s17, 0
      %p59 = por %p57, %p58
      %p60 = scmp.ne.s32.totalorder %s48, %s49
      %p61 = scmp.eq.s32.totalorder %s18, 1
      %p62 = por %p60, %p61
      %p64 = scmp.ne.s32.totalorder %s49, %s63
      %p65 = scmp.eq.s32.totalorder %s18, 0
      %p66 = por %p64, %p65
      %s68 = sadd.s32 %s67, 1
      %p71 = scmp.eq.s32.totalorder %s12, 1
      %p72 = scmp.ne.s32.totalorder %s67, %s69
      %p73 = scmp.eq.s32.totalorder %s12, 0
      %p74 = por %p72, %p73
      %p75 = scmp.ne.s32.totalorder %s67, %s69
      %p76 = scmp.eq.s32.totalorder %s17, 1
      %p77 = por %p75, %p76
      %p78 = scmp.ne.s32.totalorder %s69, %s70
      %p79 = scmp.eq.s32.totalorder %s17, 0
      %p80 = por %p78, %p79
      %p81 = scmp.ne.s32.totalorder %s69, %s70
      %p82 = scmp.eq.s32.totalorder %s18, 1
      %p83 = por %p81, %p82
      %p85 = scmp.ne.s32.totalorder %s70, %s84
      %p86 = scmp.eq.s32.totalorder %s18, 0
      %p87 = por %p85, %p86
      %s88 = ssub.s32 %s12, %s19
      %p89 = scmp.eq.s32.totalorder %s88, 0
      %s91 = sadd.s32 %s90, 1
      %s92 = scalar_select %p89, %s90, %s91
      %p95 = pneg %p89
      %p96 = scmp.eq.s32.totalorder %s12, 1
      %p97 = por %p95, %p96
      %p98 = scmp.ne.s32.totalorder %s90, %s93
      %p99 = scmp.eq.s32.totalorder %s12, 0
      %p100 = por %p98, %p99
      %p101 = scmp.ne.s32.totalorder %s90, %s93
      %p102 = scmp.eq.s32.totalorder %s17, 1
      %p103 = por %p101, %p102
      %p104 = scmp.ne.s32.totalorder %s93, %s94
      %p105 = scmp.eq.s32.totalorder %s17, 0
      %p106 = por %p104, %p105
      %p107 = scmp.ne.s32.totalorder %s93, %s94
      %p108 = scmp.eq.s32.totalorder %s18, 1
      %p109 = por %p107, %p108
      %p111 = scmp.ne.s32.totalorder %s94, %s110
      %p112 = scmp.eq.s32.totalorder %s18, 0
      %p113 = por %p111, %p112
      %p114 = scmp.le.s32.totalorder 1, %s12
      %p115 = scmp.lt.s32.totalorder %s12, 3
      %p116 = pnand %p114, %p115
      %p117 = pneg %p116
      // Predicated region
      $region9: #{tpu_custom_call.1} parent=5 // pred_check
        _
      $region10: #{tpu_custom_call.1} parent=5 // pred_check_branch
        %119 = sbr.rel (%p116) target = $region12
      $region11: #{tpu_custom_call.1} parent=5 // pred_region
        %s120 = ssub.s32 %s12, 1
        // Predicated region
        $region13: #{tpu_custom_call.1} parent=11 // pred_check
          %p121 = pneg %p59
        $region14: #{tpu_custom_call.1} parent=11 // pred_check_branch
          %123 = sbr.rel (%p121) target = $region16
        $region15: #{tpu_custom_call.1} parent=11 // pred_region
          _
        $region16: #{tpu_custom_call.1} parent=11 // pred_fallthru
          _
        // Predicated region
        $region17: #{tpu_custom_call.1} parent=11 // pred_check
          %p124 = pneg %p80
        $region18: #{tpu_custom_call.1} parent=11 // pred_check_branch
          %126 = sbr.rel (%p124) target = $region20
        $region19: #{tpu_custom_call.1} parent=11 // pred_region
          _
        $region20: #{tpu_custom_call.1} parent=11 // pred_fallthru
          _
      $region12: #{tpu_custom_call.1} parent=5 // pred_fallthru
        _
      %p127 = scmp.lt.s32.totalorder %s12, 2
      // Predicated region
      $region21: #{tpu_custom_call.1} parent=5 // pred_check
        %p128 = pneg %p127
      $region22: #{tpu_custom_call.1} parent=5 // pred_check_branch
        %130 = sbr.rel (%p128) target = $region24
      $region23: #{tpu_custom_call.1} parent=5 // pred_region
        // Predicated region
        $region25: #{tpu_custom_call.1} parent=23 // pred_check
          %p131 = pneg %p32
        $region26: #{tpu_custom_call.1} parent=23 // pred_check_branch
          %133 = sbr.rel (%p131) target = $region28
        $region27: #{tpu_custom_call.1} parent=23 // pred_region
          %p134 = scmp.lt.s32.totalorder %s12, 1
          %s135 = scalar_select %p134, %s12, 1
          %s136 = smul.addr %s135, 2
          %s137 = smul.addr %s136, 8
          %s138 = scalar_lea.vmem %s0, %s137
        $region28: #{tpu_custom_call.1} parent=23 // pred_fallthru
          _
      $region24: #{tpu_custom_call.1} parent=5 // pred_fallthru
        _
      %p139 = scmp.le.s32.totalorder 1, %s12
      %p140 = scmp.lt.s32.totalorder %s12, 3
      %p141 = pnand %p139, %p140
      %p142 = pneg %p141
      // Predicated region
      $region29: #{tpu_custom_call.1} parent=5 // pred_check
        _
      $region30: #{tpu_custom_call.1} parent=5 // pred_check_branch
        %144 = sbr.rel (%p141) target = $region32
      $region31: #{tpu_custom_call.1} parent=5 // pred_region
        %s145 = ssub.s32 %s12, 1
        %p146 = scmp.lt.s32.totalorder %s17, 1
        %s147 = scalar_select %p146, %s17, 1
        %s148 = smul.addr %s147, 2
        %s149 = smul.addr %s148, 8
        %s150 = scalar_lea.vmem %s0, %s149
        %p151 = pneg %p38
        %p152 = pneg %p35
        %p153 = pneg %p59
        %p154 = pneg %p56
        %p155 = pneg %p80
        %p156 = pneg %p77
        %p157 = pneg %p106
        %p158 = pneg %p103
        %s159 = sand.u32 %s93, 1
        %s160 = scalar_lea.sflag [#allocation3], %s159
        %s161 = sand.u32 %s93, 1
        %s162 = smul.addr %s161, 16
        %s163 = scalar_lea.vmem [#allocation2], %s162
        %p164 = scmp.lt.s32.totalorder %s17, 1
        %s165 = scalar_select %p164, %s17, 1
        %s166 = smul.addr %s165, 2
        %s167 = smul.addr %s166, 8
        %s168 = scalar_lea.vmem %s0, %s167
        %v169 = vld [vmem:[%s168] sm:$0xff]
        %v170 = vld [vmem:[%s168 + $0x8] sm:$0xff]
        %171 = vadd.xlane.f32.xlu0 %v169
        %v172 = vpop.xlane.xlu0 %171
        %173 = vadd.xlane.f32.xlu0 %v170
        %v174 = vpop.xlane.xlu0 %173
        %v175 = vmul.f32 %v169, %v169
        %v176 = vmul.f32 %v170, %v170
        %177 = vadd.xlane.f32.xlu0 %v175
        %v178 = vpop.xlane.xlu0 %177
        %179 = vadd.xlane.f32.xlu0 %v176
        %v180 = vpop.xlane.xlu0 %179
        %v181 = vrot.slane %v172, 4
        %v182 = vadd.f32 %v172, %v181
        %v183 = vrot.slane %v182, 2
        %v184 = vadd.f32 %v182, %v183
        %v185 = vrot.slane %v184, 1
        %v186 = vadd.f32 %v184, %v185
        %v187 = vrot.slane %v174, 4
        %v188 = vadd.f32 %v174, %v187
        %v189 = vrot.slane %v188, 2
        %v190 = vadd.f32 %v188, %v189
        %v191 = vrot.slane %v190, 1
        %v192 = vadd.f32 %v190, %v191
        %v193 = vrot.slane %v178, 4
        %v194 = vadd.f32 %v178, %v193
        %v195 = vrot.slane %v194, 2
        %v196 = vadd.f32 %v194, %v195
        %v197 = vrot.slane %v196, 1
        %v198 = vadd.f32 %v196, %v197
        %v199 = vrot.slane %v180, 4
        %v200 = vadd.f32 %v180, %v199
        %v201 = vrot.slane %v200, 2
        %v202 = vadd.f32 %v200, %v201
        %v203 = vrot.slane %v202, 1
        %v204 = vadd.f32 %v202, %v203
        %v205 = vmul.f32 %v186, 0.0009765625
        %v206 = vmul.f32 %v192, 0.0009765625
        %v207 = vmul.f32 %v198, 0.0009765625
        %v208 = vmul.f32 %v204, 0.0009765625
        %v209 = vmul.f32 %v205, %v205
        %v210 = vmul.f32 %v206, %v206
        %v211 = vsub.f32 %v207, %v209
        %v212 = vsub.f32 %v208, %v210
        %v213 = vadd.f32 %v211, 1e-05
        %v214 = vadd.f32 %v212, 1e-05
        %v215 = vrsqrt.pop %v213
        %v216 = vmul.f32 %v215, %v213
        %v217 = vmul.f32 %v216, %v215
        %v218 = vmul.f32 0.5, %v217
        %v219 = vsub.f32 1.5, %v218
        %v220 = vmul.f32 %v215, %v219
        %vm221 = vweird.f32 %v213
        %vm222 = vweird.f32 %v215
        %vm223 = vmor %vm221, %vm222
        %v224 = vsel %vm223, %v215, %v220
        %v225 = vrsqrt.pop %v214
        %v226 = vmul.f32 %v225, %v214
        %v227 = vmul.f32 %v226, %v225
        %v228 = vmul.f32 0.5, %v227
        %v229 = vsub.f32 1.5, %v228
        %v230 = vmul.f32 %v225, %v229
        %vm231 = vweird.f32 %v214
        %vm232 = vweird.f32 %v225
        %vm233 = vmor %vm231, %vm232
        %v234 = vsel %vm233, %v225, %v230
        %v235 = vld [vmem:[%s1] sm:$0xff]
        %v236 = vld [vmem:[%s1 + $0x8] sm:$0xff]
        %v237 = vld [vmem:[%s2] sm:$0xff]
        %v238 = vld [vmem:[%s2 + $0x8] sm:$0xff]
        %v239 = vmul.f32 %v235, %v224
        %v240 = vmul.f32 %v236, %v234
        %v241 = vmul.f32 %v205, %v239
        %v242 = vmul.f32 %v206, %v240
        %v243 = vsub.f32 %v237, %v241
        %v244 = vsub.f32 %v238, %v242
        %246 = vset.pattern.permute.xlu0 0
        %247 = vperm.xlu0 %246, %v239
        %v248 = vpop.permute.xlu0 %247
        %251 = vset.pattern.permute.xlu0 0
        %252 = vperm.xlu0 %251, %v240
        %v253 = vpop.permute.xlu0 %252
        %v255 = vmul.f32 %v169, %v248
        %v256 = vmul.f32 %v170, %v253
        %258 = vset.pattern.permute.xlu0 0
        %259 = vperm.xlu0 %258, %v243
        %v260 = vpop.permute.xlu0 %259
        %263 = vset.pattern.permute.xlu0 0
        %264 = vperm.xlu0 %263, %v244
        %v265 = vpop.permute.xlu0 %264
        %v267 = vadd.f32 %v255, %v260
        %v268 = vadd.f32 %v256, %v265
        %269 = vst [vmem:[%s163] sm:$0xff] %v267
        %270 = vst [vmem:[%s163 + $0x8] sm:$0xff] %v268
        %s271 = sand.u32 %s93, 1
        %s272 = scalar_lea.sflag [#allocation3], %s271
        %s273 = sand.u32 %s93, 1
        %s274 = smul.addr %s273, 16
        %s275 = scalar_lea.vmem [#allocation2], %s274
        // Predicated region
        $region33: #{tpu_custom_call.1} parent=31 // pred_check
          %p276 = pneg %p103
        $region34: #{tpu_custom_call.1} parent=31 // pred_check_branch
          %278 = sbr.rel (%p276) target = $region36
        $region35: #{tpu_custom_call.1} parent=31 // pred_region
          %280 = vsyncadd %s272, 0
          %s281 = smul.addr %s17, 2
          %s282 = smul.addr %s281, 8
          %s283 = scalar_lea.hbm %s3, %s282
          %s284 = sshll.u32 %s275, 4
          %s285 = int_to_ptr.vmem [resolvable:$true] %s284
          %s286 = sshll.u32 %s283, 4
          %s287 = int_to_ptr.hbm [resolvable:$true] %s286
          %292 = dma.vmem_to_hbm [thread:$0]  %s285, 256, %s287, %s272, 128, 128, 8
        $region36: #{tpu_custom_call.1} parent=31 // pred_fallthru
          _
      $region32: #{tpu_custom_call.1} parent=5 // pred_fallthru
        _
      %p293 = scmp.le.s32.totalorder 2, %s12
      // Predicated region
      $region37: #{tpu_custom_call.1} parent=5 // pred_check
        %p294 = pneg %p293
      $region38: #{tpu_custom_call.1} parent=5 // pred_check_branch
        %296 = sbr.rel (%p294) target = $region40
      $region39: #{tpu_custom_call.1} parent=5 // pred_region
        %s297 = ssub.s32 %s12, 2
        // Predicated region
        $region41: #{tpu_custom_call.1} parent=39 // pred_check
          %p298 = pneg %p109
        $region42: #{tpu_custom_call.1} parent=39 // pred_check_branch
          %300 = sbr.rel (%p298) target = $region44
        $region43: #{tpu_custom_call.1} parent=39 // pred_region
          %s301 = sand.u32 %s94, 1
          %s302 = scalar_lea.sflag [#allocation3], %s301
          %s303 = sand.u32 %s94, 1
          %s304 = smul.addr %s303, 16
          %s305 = scalar_lea.vmem [#allocation2], %s304
          %307 = dma.done %s302, 256
        $region44: #{tpu_custom_call.1} parent=39 // pred_fallthru
          _
      $region40: #{tpu_custom_call.1} parent=5 // pred_fallthru
        _
    $region6: #{tpu_custom_call.1} parent=1 // loop_footer
      %s16 = sadd.s32 1, %s12
    $region7: #{tpu_custom_call.1} parent=1 // loop_footer_branch
      %11 = sbr.rel target = $region3
    $region8: #{tpu_custom_call.1} parent=1 // loop_exit
      _
    %308 = vsyncpa [#allocation3], 1
    %s309 = scalar_lea.sflag [#allocation3], 1
    %310 = vsyncpa %s309, 1

</llo_original>
